<compile_context>
chip_gen: v7x
topology: tpu7x:2x2x1
jax: 0.10.0
libtpu: 0.0.40
codegen_flags: <defaults>
</compile_context>

<pallas_src>
import jax
import jax.numpy as jnp
from jax.experimental import pallas as pl
from jax.experimental.pallas import tpu as pltpu


_VMEM_LIMIT_BYTES = 48 * 1024 * 1024   # > v5e 16 MiB scoped default, < v7x 64 MiB physical
_ACT_TILE_BUDGET = 6 * 1024 * 1024     # per activation path, per row tile (conservative)


# ----------------------------- Pallas kernel ------------------------------ #
def _chain_kernel(m_ref, z_ref, wm_ref, bm_ref, wz_ref, bz_ref,
                  m_out_ref, z_out_ref):
    """One grid step == one row tile of BOTH activation paths, chain unrolled.

    All n_blocks bf16 weights/biases are VMEM-resident (constant index_map);
    the block chain is statically unrolled, so there is no per-block grid-step
    overhead and the m/z matmuls of successive blocks can overlap on the MXU.
    """
    n_blocks = wm_ref.shape[0]
    m = m_ref[...].astype(jnp.bfloat16)
    z = z_ref[...].astype(jnp.bfloat16)
    m_f32 = m_ref[...].astype(jnp.float32)   # only used if n_blocks == 0
    z_f32 = z_ref[...].astype(jnp.float32)
    for i in range(n_blocks):                # static unroll; n_blocks is compile-time
        # bf16 operands on the MXU, f32 accumulation, f32 bias+ReLU epilogue.
        m_f32 = jnp.maximum(
            jnp.dot(m, wm_ref[i], preferred_element_type=jnp.float32) + bm_ref[i], 0.0)
        z_f32 = jnp.maximum(
            jnp.dot(z, wz_ref[i], preferred_element_type=jnp.float32) + bz_ref[i], 0.0)
        if i + 1 < n_blocks:
            m = m_f32.astype(jnp.bfloat16)   # bf16 between blocks (same matmul inputs)
            z = z_f32.astype(jnp.bfloat16)
    m_out_ref[...] = m_f32.astype(m_out_ref.dtype)   # final block stays f32
    z_out_ref[...] = z_f32.astype(z_out_ref.dtype)


def _num_row_tiles(rows, channels):
    # f32 in + f32 out row-tile copies (double-buffered by the pipeline).
    bytes_per_row = channels * 4 * 4
    max_rows = max(8, (_ACT_TILE_BUDGET // bytes_per_row) // 8 * 8)
    return pl.cdiv(rows, max_rows)


def _pad_rows_to_tiles(x2, n_tiles):
    rows = x2.shape[0]
    tile = -(-rows // n_tiles)          # ceil-div
    tile = max(8, -(-tile // 8) * 8)    # round up to sublane multiple
    padded_rows = tile * n_tiles
    if padded_rows != rows:
        # Padded rows run relu(0*W + b) through the chain and are sliced off;
        # the op is row-wise so they never contaminate valid rows.
        x2 = jnp.pad(x2, ((0, padded_rows - rows), (0, 0)))
    return x2, tile


@jax.jit
def chain_forward(m, z, wm, bm, wz, bz):
    """Run an n-block chain of (linear+ReLU on m, linear+ReLU on z) fused in
    ONE pallas_call.

    m:  (..., c_m)      z:  (..., c_z)
    wm: (n, c_m, c_m)   bm: (n, 1, c_m)   wz: (n, c_z, c_z)   bz: (n, 1, c_z)
    """
    c_m, c_z = m.shape[-1], z.shape[-1]
    m2 = m.reshape(-1, c_m)
    z2 = z.reshape(-1, c_z)
    rows_m, rows_z = m2.shape[0], z2.shape[0]
    n_blocks = wm.shape[0]

    # One shared row-tile grid for both paths (rows are independent through the
    # chain, so each tile runs the whole chain with its activations resident).
    n_tiles = max(_num_row_tiles(rows_m, c_m), _num_row_tiles(rows_z, c_z), 1)
    m2p, tm = _pad_rows_to_tiles(m2, n_tiles)
    z2p, tz = _pad_rows_to_tiles(z2, n_tiles)

    m_out, z_out = pl.pallas_call(
        _chain_kernel,
        out_shape=(jax.ShapeDtypeStruct((tm * n_tiles, c_m), m.dtype),
                   jax.ShapeDtypeStruct((tz * n_tiles, c_z), z.dtype)),
        grid_spec=pltpu.PrefetchScalarGridSpec(
            num_scalar_prefetch=0,
            grid=(n_tiles,),
            in_specs=[
                pl.BlockSpec((tm, c_m), lambda i: (i, 0)),                 # m row tile
                pl.BlockSpec((tz, c_z), lambda i: (i, 0)),                 # z row tile
                pl.BlockSpec((n_blocks, c_m, c_m), lambda i: (0, 0, 0)),   # all w_m (resident)
                pl.BlockSpec((n_blocks, 1, c_m), lambda i: (0, 0, 0)),     # all b_m (resident)
                pl.BlockSpec((n_blocks, c_z, c_z), lambda i: (0, 0, 0)),   # all w_z (resident)
                pl.BlockSpec((n_blocks, 1, c_z), lambda i: (0, 0, 0)),     # all b_z (resident)
            ],
            out_specs=(
                pl.BlockSpec((tm, c_m), lambda i: (i, 0)),
                pl.BlockSpec((tz, c_z), lambda i: (i, 0)),
            ),
        ),
        compiler_params=pltpu.CompilerParams(
            # Row tiles are independent -> megacore split on v7x; harmless on
            # single-TC chips.
            dimension_semantics=("parallel",),
            vmem_limit_bytes=_VMEM_LIMIT_BYTES,
        ),
    )(m2p, z2p, wm, bm, wz, bz)
    return (m_out[:rows_m].reshape(m.shape), z_out[:rows_z].reshape(z.shape))


# --------------------------- synthetic block ------------------------------- #
class SyntheticBlock:
    """Stands in for an arbitrary nn.Module block: (m, z) -> (m', z')."""

    def __init__(self, key, c_m, c_z):
        km, kz = jax.random.split(key)
        self.w_m = (jax.random.normal(km, (c_m, c_m), jnp.float32)
                    / jnp.sqrt(jnp.float32(c_m))).astype(jnp.bfloat16)
        self.b_m = jnp.zeros((1, c_m), jnp.float32)    # stored as (1, D)
        self.w_z = (jax.random.normal(kz, (c_z, c_z), jnp.float32)
                    / jnp.sqrt(jnp.float32(c_z))).astype(jnp.bfloat16)
        self.b_z = jnp.zeros((1, c_z), jnp.float32)

    def __call__(self, m, z):
        # Single fused (m+z) jitted pallas_call: a length-1 chain.  NOTE: the
        # per-block path round-trips activations through HBM once per block;
        # prefer fused_chain_forward for the whole chain.
        return chain_forward(m, z,
                             self.w_m[None], self.b_m[None],
                             self.w_z[None], self.b_z[None])


# ------------------------ wrapper (faithful port) -------------------------- #
def to_device(x, device):
    # TODO(synk): cross-device placement (.to(device)) has no single-kernel
    # Pallas equivalent; on one TPU it is a semantic no-op.
    return x


class AutoModelParallelBlock:
    def __init__(self, block, device, out_device=None):
        self.block = block
        self.device = device
        self.block = to_device(self.block, self.device)
        self.out_device = out_device if out_device is not None else self.device

    def __call__(self, *args, **kwargs):
        def get_tensors(r):
            results = []
            for x in r:
                if isinstance(x, jax.Array):
                    results.append(x)
                else:
                    results.extend(get_tensors(x))
            return results

        largs = get_tensors(args)
        lkwargs = kwargs
        largs = [to_device(x, device=self.device) for x in largs]
        lkwargs = {k: to_device(v, device=self.device) for k, v in lkwargs.items()}
        # TODO(synk): torch.set_grad_enabled(True) has no forward-pass effect.
        outputs = self.block(*largs, **lkwargs)
        outputs = [to_device(x, device=self.out_device) for x in outputs]
        return (outputs[0], outputs[1])


class AutoModelParallel:
    def __init__(self, blocks, device_group):
        self.device_group = device_group
        if len(device_group) == 1:
            self.indices = [0] * len(blocks)
        elif len(device_group) == 2:
            # Faithful to the PyTorch rule (assumes len(blocks) >= 8).
            self.indices = [0] * 8 + [1] * (len(blocks) - 8)
        else:
            blocks_per_device = len(blocks) // len(device_group)
            self.indices = [
                min(i // blocks_per_device, len(device_group) - 1)
                for i in range(len(blocks))
            ]
        self.blocks = [
            AutoModelParallelBlock(
                block,
                self.device_group[self.indices[i]],
                out_device=self.device_group[0],
            )
            for i, block in enumerate(blocks)
        ]
        for i in range(len(self.blocks)):
            if i == len(self.blocks) - 1:
                self.blocks[i].out_device = self.device_group[0]
            else:
                self.blocks[i].out_device = self.blocks[i].device

    def __getitem__(self, idx):
        return self.blocks[idx]

    def __len__(self):
        return len(self.blocks)

    def forward(self, *args, **kwargs):
        raise NotImplementedError(
            "AutoModelParallel cannot replace your forward logic. "
            "Use the .blocks attribute or index the model."
        )


def fused_chain_forward(model, m, z):
    """Single pallas_call over the whole block chain (recommended perf path)."""
    wm = jnp.stack([blk.block.w_m for blk in model.blocks])
    bm = jnp.stack([blk.block.b_m for blk in model.blocks])
    wz = jnp.stack([blk.block.w_z for blk in model.blocks])
    bz = jnp.stack([blk.block.b_z for blk in model.blocks])
    return chain_forward(m, z, wm, bm, wz, bz)


def reference_chain(m, z, blocks):
    """Pure-JAX reference with the same bf16-operand / f32-accumulate math."""
    m2 = m.reshape(-1, m.shape[-1]).astype(jnp.float32)
    z2 = z.reshape(-1, z.shape[-1]).astype(jnp.float32)
    for blk in blocks:
        m2 = jnp.maximum(
            jnp.dot(m2.astype(jnp.bfloat16), blk.w_m,
                    preferred_element_type=jnp.float32) + blk.b_m, 0.0)
        z2 = jnp.maximum(
            jnp.dot(z2.astype(jnp.bfloat16), blk.w_z,
                    preferred_element_type=jnp.float32) + blk.b_z, 0.0)
    return m2.reshape(m.shape), z2.reshape(z.shape)


# --------------------------------- main ------------------------------------ #
if __name__ == "__main__":
    key = jax.random.PRNGKey(0)
    c_m = 128   # MSA channel dim (lane-aligned)
    c_z = 128   # pair channel dim (lane-aligned)
    n_blocks = 10

    keys = jax.random.split(key, n_blocks + 2)
    blocks = [SyntheticBlock(keys[i], c_m, c_z) for i in range(n_blocks)]

    # Two logical "devices" -> indices = [0]*8 + [1]*(n_blocks - 8)
    device_group = [0, 1]
    model = AutoModelParallel(blocks, device_group)

    # (n_seq, n_res, c_m) and (n_res, n_res, c_z), as in the Evoformer stack.
    m0 = jax.random.normal(keys[-2], (4, 16, c_m), jnp.float32)
    z0 = jax.random.normal(keys[-1], (16, 16, c_z), jnp.float32)

    # Faithful per-block usage of the wrapper (forward() raises by design);
    # each indexed block is one fused (m+z) jitted pallas_call.
    m, z = m0, z0
    for i in range(len(model)):
        m, z = model[i](m, z)
    jax.block_until_ready((m, z))

    # Fused whole-chain single pallas_call (the recommended perf path).
    m_f, z_f = fused_chain_forward(model, m0, z0)
    jax.block_until_ready((m_f, z_f))

    # Pure-JAX reference.
    m_ref, z_ref = reference_chain(m0, z0, blocks)
    jax.block_until_ready((m_ref, z_ref))

    assert jnp.allclose(m_f, m, atol=2e-2, rtol=2e-2), "fused vs per-block m mismatch"
    assert jnp.allclose(z_f, z, atol=2e-2, rtol=2e-2), "fused vs per-block z mismatch"
    assert jnp.allclose(m_f, m_ref, atol=2e-2, rtol=2e-2), "fused vs reference m mismatch"
    assert jnp.allclose(z_f, z_ref, atol=2e-2, rtol=2e-2), "fused vs reference z mismatch"

    print("KERNEL_OK")
</pallas_src>

<mosaic_0001>
module attributes {stable_mosaic.version = 11 : i64} {
  func.func @_chain_kernel(%arg0: i32, %arg1: memref<64x128xf32, #tpu.memory_space<vmem>>, %arg2: memref<256x128xf32, #tpu.memory_space<vmem>>, %arg3: memref<1x128x128xbf16, #tpu.memory_space<vmem>>, %arg4: memref<1x1x128xf32, #tpu.memory_space<vmem>>, %arg5: memref<1x128x128xbf16, #tpu.memory_space<vmem>>, %arg6: memref<1x1x128xf32, #tpu.memory_space<vmem>>, %arg7: memref<64x128xf32, #tpu.memory_space<vmem>>, %arg8: memref<256x128xf32, #tpu.memory_space<vmem>>) attributes {dimension_semantics = [#tpu.dimension_semantics<parallel>], iteration_bounds = array<i64: 1>, scalar_prefetch = 0 : i64, scratch_operands = 0 : i64, tpu.core_type = #tpu.core_type<tc>, window_params = [{transform_indices = @transform_0, window_bounds = array<i64: 64, 128>}, {transform_indices = @transform_1, window_bounds = array<i64: 256, 128>}, {pipeline_mode = #tpu.pipeline_mode<synchronous>, transform_indices = @transform_2, window_bounds = array<i64: 1, 128, 128>}, {pipeline_mode = #tpu.pipeline_mode<synchronous>, transform_indices = @transform_3, window_bounds = array<i64: 1, 1, 128>}, {pipeline_mode = #tpu.pipeline_mode<synchronous>, transform_indices = @transform_4, window_bounds = array<i64: 1, 128, 128>}, {pipeline_mode = #tpu.pipeline_mode<synchronous>, transform_indices = @transform_5, window_bounds = array<i64: 1, 1, 128>}, {transform_indices = @transform_6, window_bounds = array<i64: 64, 128>}, {transform_indices = @transform_7, window_bounds = array<i64: 256, 128>}]} {
    %c0 = arith.constant 0 : index
    %c0_0 = arith.constant 0 : index
    %0 = vector.load %arg1[%c0, %c0_0] : memref<64x128xf32, #tpu.memory_space<vmem>>, vector<64x128xf32>
    %1 = arith.truncf %0 : vector<64x128xf32> to vector<64x128xbf16>
    %c0_1 = arith.constant 0 : index
    %c0_2 = arith.constant 0 : index
    %2 = vector.load %arg2[%c0_1, %c0_2] : memref<256x128xf32, #tpu.memory_space<vmem>>, vector<256x128xf32>
    %3 = arith.truncf %2 : vector<256x128xf32> to vector<256x128xbf16>
    %c0_3 = arith.constant 0 : index
    %c0_4 = arith.constant 0 : index
    %c0_5 = arith.constant 0 : index
    %4 = vector.load %arg3[%c0_3, %c0_4, %c0_5] : memref<1x128x128xbf16, #tpu.memory_space<vmem>>, vector<1x128x128xbf16>
    %5 = vector.shape_cast %4 : vector<1x128x128xbf16> to vector<128x128xbf16>
    %cst = arith.constant dense<0.000000e+00> : vector<64x128xf32>
    %6 = tpu.matmul %1, %5, %cst {dimension_numbers = #tpu.dot_dimension_numbers<[1], [0], [0], [1], [0, 0, 1, 1], [], []>} : vector<64x128xbf16>, vector<128x128xbf16>, vector<64x128xf32> -> vector<64x128xf32>
    %c0_6 = arith.constant 0 : index
    %c0_7 = arith.constant 0 : index
    %c0_8 = arith.constant 0 : index
    %7 = vector.load %arg4[%c0_6, %c0_7, %c0_8] : memref<1x1x128xf32, #tpu.memory_space<vmem>>, vector<1x1x128xf32>
    %8 = vector.shape_cast %7 : vector<1x1x128xf32> to vector<1x128xf32>
    %9 = vector.broadcast %8 : vector<1x128xf32> to vector<64x128xf32>
    %10 = arith.addf %6, %9 : vector<64x128xf32>
    %cst_9 = arith.constant 0.000000e+00 : f32
    %11 = vector.broadcast %cst_9 : f32 to vector<64x128xf32>
    %12 = arith.maximumf %10, %11 : vector<64x128xf32>
    %c0_10 = arith.constant 0 : index
    %c0_11 = arith.constant 0 : index
    %c0_12 = arith.constant 0 : index
    %13 = vector.load %arg5[%c0_10, %c0_11, %c0_12] : memref<1x128x128xbf16, #tpu.memory_space<vmem>>, vector<1x128x128xbf16>
    %14 = vector.shape_cast %13 : vector<1x128x128xbf16> to vector<128x128xbf16>
    %cst_13 = arith.constant dense<0.000000e+00> : vector<256x128xf32>
    %15 = tpu.matmul %3, %14, %cst_13 {dimension_numbers = #tpu.dot_dimension_numbers<[1], [0], [0], [1], [0, 0, 1, 1], [], []>} : vector<256x128xbf16>, vector<128x128xbf16>, vector<256x128xf32> -> vector<256x128xf32>
    %c0_14 = arith.constant 0 : index
    %c0_15 = arith.constant 0 : index
    %c0_16 = arith.constant 0 : index
    %16 = vector.load %arg6[%c0_14, %c0_15, %c0_16] : memref<1x1x128xf32, #tpu.memory_space<vmem>>, vector<1x1x128xf32>
    %17 = vector.shape_cast %16 : vector<1x1x128xf32> to vector<1x128xf32>
    %18 = vector.broadcast %17 : vector<1x128xf32> to vector<256x128xf32>
    %19 = arith.addf %15, %18 : vector<256x128xf32>
    %cst_17 = arith.constant 0.000000e+00 : f32
    %20 = vector.broadcast %cst_17 : f32 to vector<256x128xf32>
    %21 = arith.maximumf %19, %20 : vector<256x128xf32>
    %c0_18 = arith.constant 0 : index
    %c0_19 = arith.constant 0 : index
    %22 = vector.load %arg7[%c0_18, %c0_19] : memref<64x128xf32, #tpu.memory_space<vmem>>, vector<64x128xf32>
    tpu.vector_store %arg7[%c0_18, %c0_19], %12 {strides = array<i32>} : memref<64x128xf32, #tpu.memory_space<vmem>>, vector<64x128xf32>,
    %c0_20 = arith.constant 0 : index
    %c0_21 = arith.constant 0 : index
    %23 = vector.load %arg8[%c0_20, %c0_21] : memref<256x128xf32, #tpu.memory_space<vmem>>, vector<256x128xf32>
    tpu.vector_store %arg8[%c0_20, %c0_21], %21 {strides = array<i32>} : memref<256x128xf32, #tpu.memory_space<vmem>>, vector<256x128xf32>,
    return
  }
  func.func @transform_0(%arg0: i32) -> (i32, i32) {
    %c0_i32 = arith.constant 0 : i32
    %c0_i32_0 = arith.constant 0 : i32
    return %arg0, %c0_i32 : i32, i32
  }
  func.func @transform_1(%arg0: i32) -> (i32, i32) {
    %c0_i32 = arith.constant 0 : i32
    %c0_i32_0 = arith.constant 0 : i32
    return %arg0, %c0_i32 : i32, i32
  }
  func.func @transform_2(%arg0: i32) -> (i32, i32, i32) {
    %c0_i32 = arith.constant 0 : i32
    %c0_i32_0 = arith.constant 0 : i32
    %c0_i32_1 = arith.constant 0 : i32
    %c0_i32_2 = arith.constant 0 : i32
    return %c0_i32, %c0_i32_0, %c0_i32_1 : i32, i32, i32
  }
  func.func @transform_3(%arg0: i32) -> (i32, i32, i32) {
    %c0_i32 = arith.constant 0 : i32
    %c0_i32_0 = arith.constant 0 : i32
    %c0_i32_1 = arith.constant 0 : i32
    %c0_i32_2 = arith.constant 0 : i32
    return %c0_i32, %c0_i32_0, %c0_i32_1 : i32, i32, i32
  }
  func.func @transform_4(%arg0: i32) -> (i32, i32, i32) {
    %c0_i32 = arith.constant 0 : i32
    %c0_i32_0 = arith.constant 0 : i32
    %c0_i32_1 = arith.constant 0 : i32
    %c0_i32_2 = arith.constant 0 : i32
    return %c0_i32, %c0_i32_0, %c0_i32_1 : i32, i32, i32
  }
  func.func @transform_5(%arg0: i32) -> (i32, i32, i32) {
    %c0_i32 = arith.constant 0 : i32
    %c0_i32_0 = arith.constant 0 : i32
    %c0_i32_1 = arith.constant 0 : i32
    %c0_i32_2 = arith.constant 0 : i32
    return %c0_i32, %c0_i32_0, %c0_i32_1 : i32, i32, i32
  }
  func.func @transform_6(%arg0: i32) -> (i32, i32) {
    %c0_i32 = arith.constant 0 : i32
    %c0_i32_0 = arith.constant 0 : i32
    return %arg0, %c0_i32 : i32, i32
  }
  func.func @transform_7(%arg0: i32) -> (i32, i32) {
    %c0_i32 = arith.constant 0 : i32
    %c0_i32_0 = arith.constant 0 : i32
    return %arg0, %c0_i32 : i32, i32
  }
}

</mosaic_0001>

<llo_original>
// kernel: chain_forward.1
$region0: #{chain_forward.1}
  #allocation0 [shape = 'u32[]', space=smem, size = 0x4, offset = 0x4, fixed_abs, tag = 'smem constant byte address 0x4 - core index']
  #allocation1 [shape = 'u32[144,128]{1,0:T(1,128)}', space=vmem, size = 0x12000, scoped, tag = 'internal scratch']
  %s0 = inlined_call_operand.hbm [shape: f32[64,128], index: 0, kind: input, shape index: {}]
  %s1 = inlined_call_operand.hbm [shape: f32[256,128], index: 1, kind: input, shape index: {}]
  %s2 = inlined_call_operand.hbm [shape: bf16[1,128,128], index: 2, kind: input, shape index: {}]
  %s3 = inlined_call_operand.vmem [shape: f32[1,1,128], index: 3, kind: input, shape index: {}]
  %s4 = inlined_call_operand.hbm [shape: bf16[1,128,128], index: 4, kind: input, shape index: {}]
  %s5 = inlined_call_operand.vmem [shape: f32[1,1,128], index: 5, kind: input, shape index: {}]
  %s6 = inlined_call_operand.hbm [shape: f32[64,128], index: 6, kind: output, shape index: {0}]
  %s7 = inlined_call_operand.hbm [shape: f32[256,128], index: 7, kind: output, shape index: {1}]
  %8 = xla_tuple %s6, %s7
  %s9 = sld [smem:[#allocation0]]
  $region58: #{chain_forward.1} parent=0
    _
  %s11 = ssub.s32 1, %s9
  %s12 = scalar_select 0, %s11, %s9
  $region1: #{chain_forward.1} parent=0
    #allocation2 [shape = 'u8[32768]{0}', space=vmem, size = 0x8000, scoped, tag = 'input window, operand 0, single buffered']
    #allocation3 [shape = 's32[1]{0}', space=sflag, size = 0x4, scoped, tag = 'scoped memory for chain_forward.1']
    #allocation4 [shape = 's32[1]{0}', space=sflag, size = 0x4, scoped, tag = 'scoped memory for chain_forward.1']
    #allocation5 [shape = 'u8[131072]{0}', space=vmem, size = 0x20000, scoped, tag = 'input window, operand 1, single buffered']
    #allocation6 [shape = 's32[1]{0}', space=sflag, size = 0x4, scoped, tag = 'scoped memory for chain_forward.1']
    #allocation7 [shape = 'u8[32768]{0}', space=vmem, size = 0x8000, scoped, tag = 'input window, operand 2, single buffered']
    #allocation8 [shape = 'u8[32768]{0}', space=vmem, size = 0x8000, scoped, tag = 'input window, operand 4, single buffered']
    #allocation9 [shape = 's32[1]{0}', space=sflag, size = 0x4, scoped, tag = 'scoped memory for chain_forward.1']
    #allocation10 [shape = 'u8[32768]{0}', space=vmem, size = 0x8000, scoped, tag = 'output window, operand 0, single buffered']
    #allocation11 [shape = 'u8[131072]{0}', space=vmem, size = 0x20000, scoped, tag = 'output window, operand 1, single buffered']
    #allocation12 [shape = 's32[1]{0}', space=sflag, size = 0x4, scoped, tag = 'scoped memory for chain_forward.1']
    %13 = vsyncpa [#allocation3], 0
    %14 = vsyncpa [#allocation6], 0
    %15 = vsyncpa [#allocation9], 0
    %16 = vsyncpa [#allocation4], 0
    %17 = vsyncpa [#allocation12], 0
    // Predicated region
    $region2: #{chain_forward.1} parent=1 // pred_check
      _
    $region3: #{chain_forward.1} parent=1 // pred_check_branch
      %19 = sbr.rel (0) target = $region5
    $region4: #{chain_forward.1} parent=1 // pred_region
      %s21 = ssub.s32 1024, 1024
      %22 = vsyncadd [#allocation3], %s21
      %s23 = sshll.u32 [#allocation2], 4
      %s24 = int_to_ptr.vmem [resolvable:$true] %s23
      %29 = dma.hbm_to_vmem [thread:$0]  %s0, 1024, %s24, [#allocation3], 128, 128, 8
    $region5: #{chain_forward.1} parent=1 // pred_fallthru
      _
    // Predicated region
    $region6: #{chain_forward.1} parent=1 // pred_check
      _
    $region7: #{chain_forward.1} parent=1 // pred_check_branch
      %31 = sbr.rel (0) target = $region9
    $region8: #{chain_forward.1} parent=1 // pred_region
      %s33 = ssub.s32 4096, 4096
      %34 = vsyncadd [#allocation6], %s33
      %s35 = sshll.u32 [#allocation5], 4
      %s36 = int_to_ptr.vmem [resolvable:$true] %s35
      %41 = dma.hbm_to_vmem [thread:$0]  %s1, 4096, %s36, [#allocation6], 128, 128, 8
    $region9: #{chain_forward.1} parent=1 // pred_fallthru
      _
    // Predicated region
    $region10: #{chain_forward.1} parent=1 // pred_check
      _
    $region11: #{chain_forward.1} parent=1 // pred_check_branch
      %43 = sbr.rel (0) target = $region13
    $region12: #{chain_forward.1} parent=1 // pred_region
      %s45 = ssub.s32 1024, 1024
      %46 = vsyncadd [#allocation6], %s45
      %s47 = sshll.u32 [#allocation7], 4
      %s48 = int_to_ptr.vmem [resolvable:$true] %s47
      %53 = dma.hbm_to_vmem [thread:$0]  %s2, 1024, %s48, [#allocation6], 64, 64, 4
    $region13: #{chain_forward.1} parent=1 // pred_fallthru
      _
    // Predicated region
    $region14: #{chain_forward.1} parent=1 // pred_check
      _
    $region15: #{chain_forward.1} parent=1 // pred_check_branch
      %55 = sbr.rel (0) target = $region17
    $region16: #{chain_forward.1} parent=1 // pred_region
      _
    $region17: #{chain_forward.1} parent=1 // pred_fallthru
      _
    // Predicated region
    $region18: #{chain_forward.1} parent=1 // pred_check
      _
    $region19: #{chain_forward.1} parent=1 // pred_check_branch
      %57 = sbr.rel (0) target = $region21
    $region20: #{chain_forward.1} parent=1 // pred_region
      %s59 = ssub.s32 1024, 1024
      %60 = vsyncadd [#allocation9], %s59
      %s61 = sshll.u32 [#allocation8], 4
      %s62 = int_to_ptr.vmem [resolvable:$true] %s61
      %67 = dma.hbm_to_vmem [thread:$0]  %s4, 1024, %s62, [#allocation9], 64, 64, 4
    $region21: #{chain_forward.1} parent=1 // pred_fallthru
      _
    // Predicated region
    $region22: #{chain_forward.1} parent=1 // pred_check
      _
    $region23: #{chain_forward.1} parent=1 // pred_check_branch
      %69 = sbr.rel (0) target = $region25
    $region24: #{chain_forward.1} parent=1 // pred_region
      _
    $region25: #{chain_forward.1} parent=1 // pred_fallthru
      _
    // Predicated region
    $region26: #{chain_forward.1} parent=1 // pred_check
      _
    $region27: #{chain_forward.1} parent=1 // pred_check_branch
      %71 = sbr.rel (0) target = $region29
    $region28: #{chain_forward.1} parent=1 // pred_region
      %72 = dma.done [#allocation3], 1024
    $region29: #{chain_forward.1} parent=1 // pred_fallthru
      _
    // Predicated region
    $region30: #{chain_forward.1} parent=1 // pred_check
      _
    $region31: #{chain_forward.1} parent=1 // pred_check_branch
      %74 = sbr.rel (0) target = $region33
    $region32: #{chain_forward.1} parent=1 // pred_region
      %75 = dma.done [#allocation6], 4096
    $region33: #{chain_forward.1} parent=1 // pred_fallthru
      _
    // Predicated region
    $region34: #{chain_forward.1} parent=1 // pred_check
      _
    $region35: #{chain_forward.1} parent=1 // pred_check_branch
      %77 = sbr.rel (0) target = $region37
    $region36: #{chain_forward.1} parent=1 // pred_region
      %78 = dma.done [#allocation6], 1024
    $region37: #{chain_forward.1} parent=1 // pred_fallthru
      _
    // Predicated region
    $region38: #{chain_forward.1} parent=1 // pred_check
      _
    $region39: #{chain_forward.1} parent=1 // pred_check_branch
      %80 = sbr.rel (0) target = $region41
    $region40: #{chain_forward.1} parent=1 // pred_region
      %81 = dma.done [#allocation9], 1024
    $region41: #{chain_forward.1} parent=1 // pred_fallthru
      _
    %v83 = vld [vmem:[#allocation2] sm:$0xff]
    %v84 = vld [vmem:[#allocation2 + $0x8] sm:$0xff]
    %v85 = vld [vmem:[#allocation2 + $0x10] sm:$0xff]
    %v86 = vld [vmem:[#allocation2 + $0x18] sm:$0xff]
    %v87 = vld [vmem:[#allocation2 + $0x20] sm:$0xff]
    %v88 = vld [vmem:[#allocation2 + $0x28] sm:$0xff]
    %v89 = vld [vmem:[#allocation2 + $0x30] sm:$0xff]
    %v90 = vld [vmem:[#allocation2 + $0x38] sm:$0xff]
    %v91 = vpack.c.bf16 %v84, %v83
    %v92 = vpack.c.bf16 %v86, %v85
    %v93 = vpack.c.bf16 %v88, %v87
    %v94 = vpack.c.bf16 %v90, %v89
    %v95 = vld [vmem:[#allocation5] sm:$0xff]
    %v96 = vld [vmem:[#allocation5 + $0x8] sm:$0xff]
    %v97 = vld [vmem:[#allocation5 + $0x10] sm:$0xff]
    %v98 = vld [vmem:[#allocation5 + $0x18] sm:$0xff]
    %v99 = vld [vmem:[#allocation5 + $0x20] sm:$0xff]
    %v100 = vld [vmem:[#allocation5 + $0x28] sm:$0xff]
    %v101 = vld [vmem:[#allocation5 + $0x30] sm:$0xff]
    %v102 = vld [vmem:[#allocation5 + $0x38] sm:$0xff]
    %v103 = vld [vmem:[#allocation5 + $0x40] sm:$0xff]
    %v104 = vld [vmem:[#allocation5 + $0x48] sm:$0xff]
    %v105 = vld [vmem:[#allocation5 + $0x50] sm:$0xff]
    %v106 = vld [vmem:[#allocation5 + $0x58] sm:$0xff]
    %v107 = vld [vmem:[#allocation5 + $0x60] sm:$0xff]
    %v108 = vld [vmem:[#allocation5 + $0x68] sm:$0xff]
    %v109 = vld [vmem:[#allocation5 + $0x70] sm:$0xff]
    %v110 = vld [vmem:[#allocation5 + $0x78] sm:$0xff]
    %v111 = vld [vmem:[#allocation5 + $0x80] sm:$0xff]
    %v112 = vld [vmem:[#allocation5 + $0x88] sm:$0xff]
    %v113 = vld [vmem:[#allocation5 + $0x90] sm:$0xff]
    %v114 = vld [vmem:[#allocation5 + $0x98] sm:$0xff]
    %v115 = vld [vmem:[#allocation5 + $0xa0] sm:$0xff]
    %v116 = vld [vmem:[#allocation5 + $0xa8] sm:$0xff]
    %v117 = vld [vmem:[#allocation5 + $0xb0] sm:$0xff]
    %v118 = vld [vmem:[#allocation5 + $0xb8] sm:$0xff]
    %v119 = vld [vmem:[#allocation5 + $0xc0] sm:$0xff]
    %v120 = vld [vmem:[#allocation5 + $0xc8] sm:$0xff]
    %v121 = vld [vmem:[#allocation5 + $0xd0] sm:$0xff]
    %v122 = vld [vmem:[#allocation5 + $0xd8] sm:$0xff]
    %v123 = vld [vmem:[#allocation5 + $0xe0] sm:$0xff]
    %v124 = vld [vmem:[#allocation5 + $0xe8] sm:$0xff]
    %v125 = vld [vmem:[#allocation5 + $0xf0] sm:$0xff]
    %v126 = vld [vmem:[#allocation5 + $0xf8] sm:$0xff]
    %v127 = vpack.c.bf16 %v96, %v95
    %v128 = vpack.c.bf16 %v98, %v97
    %v129 = vpack.c.bf16 %v100, %v99
    %v130 = vpack.c.bf16 %v102, %v101
    %v131 = vpack.c.bf16 %v104, %v103
    %v132 = vpack.c.bf16 %v106, %v105
    %v133 = vpack.c.bf16 %v108, %v107
    %v134 = vpack.c.bf16 %v110, %v109
    %v135 = vpack.c.bf16 %v112, %v111
    %v136 = vpack.c.bf16 %v114, %v113
    %v137 = vpack.c.bf16 %v116, %v115
    %v138 = vpack.c.bf16 %v118, %v117
    %v139 = vpack.c.bf16 %v120, %v119
    %v140 = vpack.c.bf16 %v122, %v121
    %v141 = vpack.c.bf16 %v124, %v123
    %v142 = vpack.c.bf16 %v126, %v125
    %v143 = vld [vmem:[#allocation7] sm:$0xf]
    %v144 = vld [vmem:[#allocation7 + $0x4] sm:$0xf]
    %v145 = vld [vmem:[#allocation7 + $0x8] sm:$0xf]
    %v146 = vld [vmem:[#allocation7 + $0xc] sm:$0xf]
    %v147 = vld [vmem:[#allocation7 + $0x10] sm:$0xf]
    %v148 = vld [vmem:[#allocation7 + $0x14] sm:$0xf]
    %v149 = vld [vmem:[#allocation7 + $0x18] sm:$0xf]
    %v150 = vld [vmem:[#allocation7 + $0x1c] sm:$0xf]
    %v151 = vld [vmem:[#allocation7 + $0x20] sm:$0xf]
    %v152 = vld [vmem:[#allocation7 + $0x24] sm:$0xf]
    %v153 = vld [vmem:[#allocation7 + $0x28] sm:$0xf]
    %v154 = vld [vmem:[#allocation7 + $0x2c] sm:$0xf]
    %v155 = vld [vmem:[#allocation7 + $0x30] sm:$0xf]
    %v156 = vld [vmem:[#allocation7 + $0x34] sm:$0xf]
    %v157 = vld [vmem:[#allocation7 + $0x38] sm:$0xf]
    %v158 = vld [vmem:[#allocation7 + $0x3c] sm:$0xf]
    %v159 = vld [vmem:[%s3] sm:$0x1]
    %v161 = vlaneseq
    %v162 = vshrl.u32 %v161, 7
    %v163 = vsub.s32 0, %v162
    %v164 = vrot.slane %v159, %v163
    %v182 = vunpack.c.l.b16 %v143
    %v183 = vunpack.c.l.b16 %v144
    %v184 = vunpack.c.l.b16 %v145
    %v185 = vunpack.c.l.b16 %v146
    %v186 = vunpack.c.l.b16 %v147
    %v187 = vunpack.c.l.b16 %v148
    %v188 = vunpack.c.l.b16 %v149
    %v189 = vunpack.c.l.b16 %v150
    %v190 = vunpack.c.l.b16 %v151
    %v191 = vunpack.c.l.b16 %v152
    %v192 = vunpack.c.l.b16 %v153
    %v193 = vunpack.c.l.b16 %v154
    %v194 = vunpack.c.l.b16 %v155
    %v195 = vunpack.c.l.b16 %v156
    %v196 = vunpack.c.l.b16 %v157
    %v197 = vunpack.c.l.b16 %v158
    %v198 = vpack.c.b16 %v183, %v182
    %v199 = vpack.c.b16 %v185, %v184
    %v200 = vpack.c.b16 %v187, %v186
    %v201 = vpack.c.b16 %v189, %v188
    %v202 = vpack.c.b16 %v191, %v190
    %v203 = vpack.c.b16 %v193, %v192
    %v204 = vpack.c.b16 %v195, %v194
    %v205 = vpack.c.b16 %v197, %v196
    %214 = vmatprep.subr.bf16.mxu0 0
    %215 = vmatpush1.bf16.msra.mxu0 %v198
    %216 = vmatprep.subr.bf16.mxu0 0
    %217 = vmatpush1.bf16.msra.mxu0 %v199
    %218 = vmatprep.subr.bf16.mxu0 0
    %219 = vmatpush1.bf16.msra.mxu0 %v200
    %220 = vmatprep.subr.bf16.mxu0 0
    %221 = vmatpush1.bf16.msra.mxu0 %v201
    %222 = vmatprep.subr.bf16.mxu0 0
    %223 = vmatpush1.bf16.msra.mxu0 %v202
    %224 = vmatprep.subr.bf16.mxu0 0
    %225 = vmatpush1.bf16.msra.mxu0 %v203
    %226 = vmatprep.subr.bf16.mxu0 0
    %227 = vmatpush1.bf16.msra.mxu0 %v204
    %228 = vmatprep.subr.bf16.mxu0 0
    %229 = vmatpush1.bf16.msra.mxu0 %v205
    %230 = vmatprep.subr.bf16.mxu0 0
    %231 = vmatpush1.bf16.msra.mxu0 0
    %232 = vmatprep.subr.bf16.mxu0 0
    %233 = vmatpush1.bf16.msra.mxu0 0
    %234 = vmatprep.subr.bf16.mxu0 0
    %235 = vmatpush1.bf16.msra.mxu0 0
    %236 = vmatprep.subr.bf16.mxu0 0
    %237 = vmatpush1.bf16.msra.mxu0 0
    %238 = vmatprep.subr.bf16.mxu0 0
    %239 = vmatpush1.bf16.msra.mxu0 0
    %240 = vmatprep.subr.bf16.mxu0 0
    %241 = vmatpush1.bf16.msra.mxu0 0
    %242 = vmatprep.subr.bf16.mxu0 0
    %243 = vmatpush1.bf16.msra.mxu0 0
    %244 = vmatprep.subr.bf16.mxu0 0
    %245 = vmatpush1.bf16.msra.mxu0 0
    %246 = vmatprep.mubr.bf16.mxu0 0
    %247 = vmatmul.mubr.bf16.gmra.mrb[0].mxu0 %v91
    %v248 = vpop.f32.mrb[0].mxu0
    %v249 = vadd.f32 %v164, %v248
    %v250 = vpop.f32.mrb[0].mxu0
    %v251 = vpop.f32.mrb[0].mxu0
    %v252 = vadd.f32 %v164, %v251
    %v253 = vpop.f32.mrb[0].mxu0
    %254 = vmatprep.mubr.bf16.mxu0 0
    %255 = vmatmul.mubr.bf16.gmra.mrb[0].mxu0 %v92
    %v256 = vpop.f32.mrb[0].mxu0
    %v257 = vadd.f32 %v164, %v256
    %v258 = vpop.f32.mrb[0].mxu0
    %v259 = vpop.f32.mrb[0].mxu0
    %v260 = vadd.f32 %v164, %v259
    %v261 = vpop.f32.mrb[0].mxu0
    %262 = vmatprep.mubr.bf16.mxu0 0
    %263 = vmatmul.mubr.bf16.gmra.mrb[0].mxu0 %v93
    %v264 = vpop.f32.mrb[0].mxu0
    %v265 = vadd.f32 %v164, %v264
    %v266 = vpop.f32.mrb[0].mxu0
    %v267 = vpop.f32.mrb[0].mxu0
    %v268 = vadd.f32 %v164, %v267
    %v269 = vpop.f32.mrb[0].mxu0
    %270 = vmatprep.mubr.bf16.mxu0 0
    %271 = vmatmul.mubr.bf16.gmra.mrb[0].mxu0 %v94
    %v272 = vpop.f32.mrb[0].mxu0
    %v273 = vadd.f32 %v164, %v272
    %v274 = vpop.f32.mrb[0].mxu0
    %v275 = vpop.f32.mrb[0].mxu0
    %v276 = vadd.f32 %v164, %v275
    %v277 = vpop.f32.mrb[0].mxu0
    %278 = vdwg.mxu0
    %v279 = vmax.f32 %v249, 0.0
    %v280 = vmax.f32 %v252, 0.0
    %v281 = vmax.f32 %v257, 0.0
    %v282 = vmax.f32 %v260, 0.0
    %v283 = vmax.f32 %v265, 0.0
    %v284 = vmax.f32 %v268, 0.0
    %v285 = vmax.f32 %v273, 0.0
    %v286 = vmax.f32 %v276, 0.0
    %v287 = vld [vmem:[#allocation8] sm:$0xf]
    %v288 = vld [vmem:[#allocation8 + $0x4] sm:$0xf]
    %v289 = vld [vmem:[#allocation8 + $0x8] sm:$0xf]
    %v290 = vld [vmem:[#allocation8 + $0xc] sm:$0xf]
    %v291 = vld [vmem:[#allocation8 + $0x10] sm:$0xf]
    %v292 = vld [vmem:[#allocation8 + $0x14] sm:$0xf]
    %v293 = vld [vmem:[#allocation8 + $0x18] sm:$0xf]
    %v294 = vld [vmem:[#allocation8 + $0x1c] sm:$0xf]
    %v295 = vld [vmem:[#allocation8 + $0x20] sm:$0xf]
    %v296 = vld [vmem:[#allocation8 + $0x24] sm:$0xf]
    %v297 = vld [vmem:[#allocation8 + $0x28] sm:$0xf]
    %v298 = vld [vmem:[#allocation8 + $0x2c] sm:$0xf]
    %v299 = vld [vmem:[#allocation8 + $0x30] sm:$0xf]
    %v300 = vld [vmem:[#allocation8 + $0x34] sm:$0xf]
    %v301 = vld [vmem:[#allocation8 + $0x38] sm:$0xf]
    %v302 = vld [vmem:[#allocation8 + $0x3c] sm:$0xf]
    %v303 = vld [vmem:[%s5] sm:$0x1]
    %v305 = vlaneseq
    %v306 = vshrl.u32 %v305, 7
    %v307 = vsub.s32 0, %v306
    %v308 = vrot.slane %v303, %v307
    %v326 = vunpack.c.l.b16 %v287
    %v327 = vunpack.c.l.b16 %v288
    %v328 = vunpack.c.l.b16 %v289
    %v329 = vunpack.c.l.b16 %v290
    %v330 = vunpack.c.l.b16 %v291
    %v331 = vunpack.c.l.b16 %v292
    %v332 = vunpack.c.l.b16 %v293
    %v333 = vunpack.c.l.b16 %v294
    %v334 = vunpack.c.l.b16 %v295
    %v335 = vunpack.c.l.b16 %v296
    %v336 = vunpack.c.l.b16 %v297
    %v337 = vunpack.c.l.b16 %v298
    %v338 = vunpack.c.l.b16 %v299
    %v339 = vunpack.c.l.b16 %v300
    %v340 = vunpack.c.l.b16 %v301
    %v341 = vunpack.c.l.b16 %v302
    %v342 = vpack.c.b16 %v327, %v326
    %v343 = vpack.c.b16 %v329, %v328
    %v344 = vpack.c.b16 %v331, %v330
    %v345 = vpack.c.b16 %v333, %v332
    %v346 = vpack.c.b16 %v335, %v334
    %v347 = vpack.c.b16 %v337, %v336
    %v348 = vpack.c.b16 %v339, %v338
    %v349 = vpack.c.b16 %v341, %v340
    %358 = vmatprep.subr.bf16.mxu0 0
    %359 = vmatpush1.bf16.msra.mxu0 %v342
    %360 = vmatprep.subr.bf16.mxu0 0
    %361 = vmatpush1.bf16.msra.mxu0 %v343
    %362 = vmatprep.subr.bf16.mxu0 0
    %363 = vmatpush1.bf16.msra.mxu0 %v344
    %364 = vmatprep.subr.bf16.mxu0 0
    %365 = vmatpush1.bf16.msra.mxu0 %v345
    %366 = vmatprep.subr.bf16.mxu0 0
    %367 = vmatpush1.bf16.msra.mxu0 %v346
    %368 = vmatprep.subr.bf16.mxu0 0
    %369 = vmatpush1.bf16.msra.mxu0 %v347
    %370 = vmatprep.subr.bf16.mxu0 0
    %371 = vmatpush1.bf16.msra.mxu0 %v348
    %372 = vmatprep.subr.bf16.mxu0 0
    %373 = vmatpush1.bf16.msra.mxu0 %v349
    %374 = vmatprep.subr.bf16.mxu0 0
    %375 = vmatpush1.bf16.msra.mxu0 0
    %376 = vmatprep.subr.bf16.mxu0 0
    %377 = vmatpush1.bf16.msra.mxu0 0
    %378 = vmatprep.subr.bf16.mxu0 0
    %379 = vmatpush1.bf16.msra.mxu0 0
    %380 = vmatprep.subr.bf16.mxu0 0
    %381 = vmatpush1.bf16.msra.mxu0 0
    %382 = vmatprep.subr.bf16.mxu0 0
    %383 = vmatpush1.bf16.msra.mxu0 0
    %384 = vmatprep.subr.bf16.mxu0 0
    %385 = vmatpush1.bf16.msra.mxu0 0
    %386 = vmatprep.subr.bf16.mxu0 0
    %387 = vmatpush1.bf16.msra.mxu0 0
    %388 = vmatprep.subr.bf16.mxu0 0
    %389 = vmatpush1.bf16.msra.mxu0 0
    %390 = vmatprep.mubr.bf16.mxu0 0
    %391 = vmatmul.mubr.bf16.gmra.mrb[0].mxu0 %v127
    %v392 = vpop.f32.mrb[0].mxu0
    %v393 = vadd.f32 %v308, %v392
    %v394 = vpop.f32.mrb[0].mxu0
    %v395 = vpop.f32.mrb[0].mxu0
    %v396 = vadd.f32 %v308, %v395
    %v397 = vpop.f32.mrb[0].mxu0
    %398 = vmatprep.mubr.bf16.mxu0 0
    %399 = vmatmul.mubr.bf16.gmra.mrb[0].mxu0 %v128
    %v400 = vpop.f32.mrb[0].mxu0
    %v401 = vadd.f32 %v308, %v400
    %v402 = vpop.f32.mrb[0].mxu0
    %v403 = vpop.f32.mrb[0].mxu0
    %v404 = vadd.f32 %v308, %v403
    %v405 = vpop.f32.mrb[0].mxu0
    %406 = vmatprep.mubr.bf16.mxu0 0
    %407 = vmatmul.mubr.bf16.gmra.mrb[0].mxu0 %v129
    %v408 = vpop.f32.mrb[0].mxu0
    %v409 = vadd.f32 %v308, %v408
    %v410 = vpop.f32.mrb[0].mxu0
    %v411 = vpop.f32.mrb[0].mxu0
    %v412 = vadd.f32 %v308, %v411
    %v413 = vpop.f32.mrb[0].mxu0
    %414 = vmatprep.mubr.bf16.mxu0 0
    %415 = vmatmul.mubr.bf16.gmra.mrb[0].mxu0 %v130
    %v416 = vpop.f32.mrb[0].mxu0
    %v417 = vadd.f32 %v308, %v416
    %v418 = vpop.f32.mrb[0].mxu0
    %v419 = vpop.f32.mrb[0].mxu0
    %v420 = vadd.f32 %v308, %v419
    %v421 = vpop.f32.mrb[0].mxu0
    %422 = vmatprep.mubr.bf16.mxu0 0
    %423 = vmatmul.mubr.bf16.gmra.mrb[0].mxu0 %v131
    %v424 = vpop.f32.mrb[0].mxu0
    %v425 = vadd.f32 %v308, %v424
    %v426 = vpop.f32.mrb[0].mxu0
    %v427 = vpop.f32.mrb[0].mxu0
    %v428 = vadd.f32 %v308, %v427
    %v429 = vpop.f32.mrb[0].mxu0
    %430 = vmatprep.mubr.bf16.mxu0 0
    %431 = vmatmul.mubr.bf16.gmra.mrb[0].mxu0 %v132
    %v432 = vpop.f32.mrb[0].mxu0
    %v433 = vadd.f32 %v308, %v432
    %v434 = vpop.f32.mrb[0].mxu0
    %v435 = vpop.f32.mrb[0].mxu0
    %v436 = vadd.f32 %v308, %v435
    %v437 = vpop.f32.mrb[0].mxu0
    %438 = vmatprep.mubr.bf16.mxu0 0
    %439 = vmatmul.mubr.bf16.gmra.mrb[0].mxu0 %v133
    %v440 = vpop.f32.mrb[0].mxu0
    %v441 = vadd.f32 %v308, %v440
    %v442 = vpop.f32.mrb[0].mxu0
    %v443 = vpop.f32.mrb[0].mxu0
    %v444 = vadd.f32 %v308, %v443
    %v445 = vpop.f32.mrb[0].mxu0
    %446 = vmatprep.mubr.bf16.mxu0 0
    %447 = vmatmul.mubr.bf16.gmra.mrb[0].mxu0 %v134
    %v448 = vpop.f32.mrb[0].mxu0
    %v449 = vadd.f32 %v308, %v448
    %v450 = vpop.f32.mrb[0].mxu0
    %v451 = vpop.f32.mrb[0].mxu0
    %v452 = vadd.f32 %v308, %v451
    %v453 = vpop.f32.mrb[0].mxu0
    %454 = vmatprep.mubr.bf16.mxu0 0
    %455 = vmatmul.mubr.bf16.gmra.mrb[0].mxu0 %v135
    %v456 = vpop.f32.mrb[0].mxu0
    %v457 = vadd.f32 %v308, %v456
    %v458 = vpop.f32.mrb[0].mxu0
    %v459 = vpop.f32.mrb[0].mxu0
    %v460 = vadd.f32 %v308, %v459
    %v461 = vpop.f32.mrb[0].mxu0
    %462 = vmatprep.mubr.bf16.mxu0 0
    %463 = vmatmul.mubr.bf16.gmra.mrb[0].mxu0 %v136
    %v464 = vpop.f32.mrb[0].mxu0
    %v465 = vadd.f32 %v308, %v464
    %v466 = vpop.f32.mrb[0].mxu0
    %v467 = vpop.f32.mrb[0].mxu0
    %v468 = vadd.f32 %v308, %v467
    %v469 = vpop.f32.mrb[0].mxu0
    %470 = vmatprep.mubr.bf16.mxu0 0
    %471 = vmatmul.mubr.bf16.gmra.mrb[0].mxu0 %v137
    %v472 = vpop.f32.mrb[0].mxu0
    %v473 = vadd.f32 %v308, %v472
    %v474 = vpop.f32.mrb[0].mxu0
    %v475 = vpop.f32.mrb[0].mxu0
    %v476 = vadd.f32 %v308, %v475
    %v477 = vpop.f32.mrb[0].mxu0
    %478 = vmatprep.mubr.bf16.mxu0 0
    %479 = vmatmul.mubr.bf16.gmra.mrb[0].mxu0 %v138
    %v480 = vpop.f32.mrb[0].mxu0
    %v481 = vadd.f32 %v308, %v480
    %v482 = vpop.f32.mrb[0].mxu0
    %v483 = vpop.f32.mrb[0].mxu0
    %v484 = vadd.f32 %v308, %v483
    %v485 = vpop.f32.mrb[0].mxu0
    %486 = vmatprep.mubr.bf16.mxu0 0
    %487 = vmatmul.mubr.bf16.gmra.mrb[0].mxu0 %v139
    %v488 = vpop.f32.mrb[0].mxu0
    %v489 = vadd.f32 %v308, %v488
    %v490 = vpop.f32.mrb[0].mxu0
    %v491 = vpop.f32.mrb[0].mxu0
    %v492 = vadd.f32 %v308, %v491
    %v493 = vpop.f32.mrb[0].mxu0
    %494 = vmatprep.mubr.bf16.mxu0 0
    %495 = vmatmul.mubr.bf16.gmra.mrb[0].mxu0 %v140
    %v496 = vpop.f32.mrb[0].mxu0
    %v497 = vadd.f32 %v308, %v496
    %v498 = vpop.f32.mrb[0].mxu0
    %v499 = vpop.f32.mrb[0].mxu0
    %v500 = vadd.f32 %v308, %v499
    %v501 = vpop.f32.mrb[0].mxu0
    %502 = vmatprep.mubr.bf16.mxu0 0
    %503 = vmatmul.mubr.bf16.gmra.mrb[0].mxu0 %v141
    %v504 = vpop.f32.mrb[0].mxu0
    %v505 = vadd.f32 %v308, %v504
    %v506 = vpop.f32.mrb[0].mxu0
    %v507 = vpop.f32.mrb[0].mxu0
    %v508 = vadd.f32 %v308, %v507
    %v509 = vpop.f32.mrb[0].mxu0
    %510 = vmatprep.mubr.bf16.mxu0 0
    %511 = vmatmul.mubr.bf16.gmra.mrb[0].mxu0 %v142
    %v512 = vpop.f32.mrb[0].mxu0
    %v513 = vadd.f32 %v308, %v512
    %v514 = vpop.f32.mrb[0].mxu0
    %v515 = vpop.f32.mrb[0].mxu0
    %v516 = vadd.f32 %v308, %v515
    %v517 = vpop.f32.mrb[0].mxu0
    %518 = vdwg.mxu0
    %v519 = vmax.f32 %v393, 0.0
    %v520 = vmax.f32 %v396, 0.0
    %v521 = vmax.f32 %v401, 0.0
    %v522 = vmax.f32 %v404, 0.0
    %v523 = vmax.f32 %v409, 0.0
    %v524 = vmax.f32 %v412, 0.0
    %v525 = vmax.f32 %v417, 0.0
    %v526 = vmax.f32 %v420, 0.0
    %v527 = vmax.f32 %v425, 0.0
    %v528 = vmax.f32 %v428, 0.0
    %v529 = vmax.f32 %v433, 0.0
    %v530 = vmax.f32 %v436, 0.0
    %v531 = vmax.f32 %v441, 0.0
    %v532 = vmax.f32 %v444, 0.0
    %v533 = vmax.f32 %v449, 0.0
    %v534 = vmax.f32 %v452, 0.0
    %v535 = vmax.f32 %v457, 0.0
    %v536 = vmax.f32 %v460, 0.0
    %v537 = vmax.f32 %v465, 0.0
    %v538 = vmax.f32 %v468, 0.0
    %v539 = vmax.f32 %v473, 0.0
    %v540 = vmax.f32 %v476, 0.0
    %v541 = vmax.f32 %v481, 0.0
    %v542 = vmax.f32 %v484, 0.0
    %v543 = vmax.f32 %v489, 0.0
    %v544 = vmax.f32 %v492, 0.0
    %v545 = vmax.f32 %v497, 0.0
    %v546 = vmax.f32 %v500, 0.0
    %v547 = vmax.f32 %v505, 0.0
    %v548 = vmax.f32 %v508, 0.0
    %v549 = vmax.f32 %v513, 0.0
    %v550 = vmax.f32 %v516, 0.0
    %551 = vst [vmem:[#allocation10] sm:$0xff] %v279
    %552 = vst [vmem:[#allocation10 + $0x8] sm:$0xff] %v280
    %553 = vst [vmem:[#allocation10 + $0x10] sm:$0xff] %v281
    %554 = vst [vmem:[#allocation10 + $0x18] sm:$0xff] %v282
    %555 = vst [vmem:[#allocation10 + $0x20] sm:$0xff] %v283
    %556 = vst [vmem:[#allocation10 + $0x28] sm:$0xff] %v284
    %557 = vst [vmem:[#allocation10 + $0x30] sm:$0xff] %v285
    %558 = vst [vmem:[#allocation10 + $0x38] sm:$0xff] %v286
    %559 = vst [vmem:[#allocation11] sm:$0xff] %v519
    %560 = vst [vmem:[#allocation11 + $0x8] sm:$0xff] %v520
    %561 = vst [vmem:[#allocation11 + $0x10] sm:$0xff] %v521
    %562 = vst [vmem:[#allocation11 + $0x18] sm:$0xff] %v522
    %563 = vst [vmem:[#allocation11 + $0x20] sm:$0xff] %v523
    %564 = vst [vmem:[#allocation11 + $0x28] sm:$0xff] %v524
    %565 = vst [vmem:[#allocation11 + $0x30] sm:$0xff] %v525
    %566 = vst [vmem:[#allocation11 + $0x38] sm:$0xff] %v526
    %567 = vst [vmem:[#allocation11 + $0x40] sm:$0xff] %v527
    %568 = vst [vmem:[#allocation11 + $0x48] sm:$0xff] %v528
    %569 = vst [vmem:[#allocation11 + $0x50] sm:$0xff] %v529
    %570 = vst [vmem:[#allocation11 + $0x58] sm:$0xff] %v530
    %571 = vst [vmem:[#allocation11 + $0x60] sm:$0xff] %v531
    %572 = vst [vmem:[#allocation11 + $0x68] sm:$0xff] %v532
    %573 = vst [vmem:[#allocation11 + $0x70] sm:$0xff] %v533
    %574 = vst [vmem:[#allocation11 + $0x78] sm:$0xff] %v534
    %575 = vst [vmem:[#allocation11 + $0x80] sm:$0xff] %v535
    %576 = vst [vmem:[#allocation11 + $0x88] sm:$0xff] %v536
    %577 = vst [vmem:[#allocation11 + $0x90] sm:$0xff] %v537
    %578 = vst [vmem:[#allocation11 + $0x98] sm:$0xff] %v538
    %579 = vst [vmem:[#allocation11 + $0xa0] sm:$0xff] %v539
    %580 = vst [vmem:[#allocation11 + $0xa8] sm:$0xff] %v540
    %581 = vst [vmem:[#allocation11 + $0xb0] sm:$0xff] %v541
    %582 = vst [vmem:[#allocation11 + $0xb8] sm:$0xff] %v542
    %583 = vst [vmem:[#allocation11 + $0xc0] sm:$0xff] %v543
    %584 = vst [vmem:[#allocation11 + $0xc8] sm:$0xff] %v544
    %585 = vst [vmem:[#allocation11 + $0xd0] sm:$0xff] %v545
    %586 = vst [vmem:[#allocation11 + $0xd8] sm:$0xff] %v546
    %587 = vst [vmem:[#allocation11 + $0xe0] sm:$0xff] %v547
    %588 = vst [vmem:[#allocation11 + $0xe8] sm:$0xff] %v548
    %589 = vst [vmem:[#allocation11 + $0xf0] sm:$0xff] %v549
    %590 = vst [vmem:[#allocation11 + $0xf8] sm:$0xff] %v550
    // Predicated region
    $region42: #{chain_forward.1} parent=1 // pred_check
      _
    $region43: #{chain_forward.1} parent=1 // pred_check_branch
      %592 = sbr.rel (0) target = $region45
    $region44: #{chain_forward.1} parent=1 // pred_region
      %s594 = ssub.s32 1024, 1024
      %595 = vsyncadd [#allocation4], %s594
      %s596 = sshll.u32 [#allocation10], 4
      %s597 = int_to_ptr.vmem [resolvable:$true] %s596
      %602 = dma.vmem_to_hbm [thread:$0]  %s597, 1024, %s6, [#allocation4], 128, 128, 8
    $region45: #{chain_forward.1} parent=1 // pred_fallthru
      _
    // Predicated region
    $region46: #{chain_forward.1} parent=1 // pred_check
      _
    $region47: #{chain_forward.1} parent=1 // pred_check_branch
      %604 = sbr.rel (0) target = $region49
    $region48: #{chain_forward.1} parent=1 // pred_region
      %s606 = ssub.s32 4096, 4096
      %607 = vsyncadd [#allocation12], %s606
      %s608 = sshll.u32 [#allocation11], 4
      %s609 = int_to_ptr.vmem [resolvable:$true] %s608
      %614 = dma.vmem_to_hbm [thread:$0]  %s609, 4096, %s7, [#allocation12], 128, 128, 8
    $region49: #{chain_forward.1} parent=1 // pred_fallthru
      _
    // Predicated region
    $region50: #{chain_forward.1} parent=1 // pred_check
      _
    $region51: #{chain_forward.1} parent=1 // pred_check_branch
      %616 = sbr.rel (0) target = $region53
    $region52: #{chain_forward.1} parent=1 // pred_region
      %617 = dma.done [#allocation4], 1024
    $region53: #{chain_forward.1} parent=1 // pred_fallthru
      _
    // Predicated region
    $region54: #{chain_forward.1} parent=1 // pred_check
      _
    $region55: #{chain_forward.1} parent=1 // pred_check_branch
      %619 = sbr.rel (0) target = $region57
    $region56: #{chain_forward.1} parent=1 // pred_region
      %620 = dma.done [#allocation12], 4096
    $region57: #{chain_forward.1} parent=1 // pred_fallthru
      _
    %621 = vsyncpa [#allocation3], 1
    %622 = vsyncpa [#allocation6], 1
    %623 = vsyncpa [#allocation9], 1
    %624 = vsyncpa [#allocation4], 1
    %625 = vsyncpa [#allocation12], 1

</llo_original>
